<compile_context>
chip_gen: v7x
topology: tpu7x:2x2x1
jax: 0.10.0
libtpu: 0.0.40
codegen_flags: <defaults>
</compile_context>

<pallas_src>
import jax
import jax.numpy as jnp
from jax.experimental import pallas as pl
from jax.experimental.pallas import tpu as pltpu

IN_FEATURES = 28 * 28   # 784
OUT_FEATURES = 512


def linear_tanh_kernel(x_ref, w_ref, b_ref, o_ref):
    # x_ref: (TM, 784) f32, w_ref: (784, 512) bf16 (upcast in VMEM -> HBM
    # weight stream stays bf16), b_ref: (1, 512) f32, o_ref: (TM, 512) f32.
    acc = jnp.dot(x_ref[...], w_ref[...].astype(jnp.float32),
                  preferred_element_type=jnp.float32)
    acc = acc + b_ref[...]                      # broadcast (1, 512) over rows
    o_ref[...] = jnp.tanh(acc).astype(o_ref.dtype)


def _cost_estimate(batch):
    bytes_accessed = (batch * IN_FEATURES * 4            # x   (f32)
                      + IN_FEATURES * OUT_FEATURES * 2   # w   (bf16)
                      + OUT_FEATURES * 4                 # b   (f32)
                      + batch * OUT_FEATURES * 4)        # out (f32)
    return pl.CostEstimate(flops=2 * batch * IN_FEATURES * OUT_FEATURES,
                           transcendentals=batch * OUT_FEATURES,
                           bytes_accessed=bytes_accessed)


def _linear_tanh_small(x, w_bf16, b2d):
    """Whole problem in one block, no grid (no pipelining overhead).

    At B=1 this is a weight-DMA-bound GEMV; the only costs left are the bf16
    weight reload and fixed custom-call overhead.
    """
    B = x.shape[0]
    return pl.pallas_call(
        linear_tanh_kernel,
        out_shape=jax.ShapeDtypeStruct((B, OUT_FEATURES), jnp.float32),
        in_specs=[
            pl.BlockSpec(memory_space=pltpu.MemorySpace.VMEM),
            pl.BlockSpec(memory_space=pltpu.MemorySpace.VMEM),
            pl.BlockSpec(memory_space=pltpu.MemorySpace.VMEM),
        ],
        out_specs=pl.BlockSpec(memory_space=pltpu.MemorySpace.VMEM),
        cost_estimate=_cost_estimate(B),
    )(x, w_bf16, b2d)


def _linear_tanh_batched(x, w_bf16, b2d, tm):
    """Tile only the batch axis; weight/bias stay VMEM-resident."""
    B = x.shape[0]
    # Split across v7x's two TensorCores only when the x/out streams dominate
    # the (duplicated-per-core) resident weight stream; otherwise keep the
    # weight single-copy with "arbitrary".
    semantics = ("parallel",) if B >= 4096 else ("arbitrary",)
    return pl.pallas_call(
        linear_tanh_kernel,
        out_shape=jax.ShapeDtypeStruct((B, OUT_FEATURES), jnp.float32),
        grid=(pl.cdiv(B, tm),),
        in_specs=[
            pl.BlockSpec((tm, IN_FEATURES), lambda i: (i, 0)),
            pl.BlockSpec((IN_FEATURES, OUT_FEATURES), lambda i: (0, 0)),
            pl.BlockSpec((1, OUT_FEATURES), lambda i: (0, 0)),
        ],
        out_specs=pl.BlockSpec((tm, OUT_FEATURES), lambda i: (i, 0)),
        compiler_params=pltpu.CompilerParams(
            dimension_semantics=semantics,
            # ~13 MiB footprint at tm=1024; raise above v5e's 16 MiB default
            # scoped limit for headroom (still well under every chip's VMEM).
            vmem_limit_bytes=32 * 1024 * 1024),
        cost_estimate=_cost_estimate(B),
    )(x, w_bf16, b2d)


def init_params(key):
    """One-time parameter prep (outside the hot path).

    Weight is stored pre-transposed (in_features, out_features) and cast to
    bf16 exactly once; bias is stored as f32 (1, 512).
    """
    kw, kb = jax.random.split(key)
    bound = 1.0 / (IN_FEATURES ** 0.5)          # PyTorch Linear-style init
    w_t = jax.random.uniform(
        kw, (IN_FEATURES, OUT_FEATURES), jnp.float32, -bound, bound)
    b = jax.random.uniform(kb, (OUT_FEATURES,), jnp.float32, -bound, bound)
    return w_t.astype(jnp.bfloat16), b.reshape(1, OUT_FEATURES)


def linear_tanh(x, w_bf16, b2d, *, tm=None):
    """x: (B, 784) f32, w_bf16: (784, 512) bf16, b2d: (1, 512) f32 -> (B, 512) f32."""
    B = x.shape[0]
    if tm is None:
        # Larger tiles for big batches (fewer grid steps); tm=512 otherwise.
        tm = 1024 if B >= 2048 else 512
    if B <= tm:
        return _linear_tanh_small(x, w_bf16, b2d)
    return _linear_tanh_batched(x, w_bf16, b2d, tm)


if __name__ == "__main__":
    key = jax.random.PRNGKey(0)
    kparam, kx, kx2 = jax.random.split(key, 3)

    # Parameters prepared once (bf16 weight cast happens here, not per call).
    w_bf16, b2d = init_params(kparam)

    def reference(x):
        # Same bf16-stored weight, f32 activations and full-precision
        # accumulation — matches the kernel's semantics (only the weight is
        # quantized).
        wr = w_bf16.astype(jnp.float32)
        return jnp.tanh(
            jnp.dot(x, wr, precision=jax.lax.Precision.HIGHEST) + b2d)

    # 1) Input matching the module: x1 = torch.randn(1, 28*28) -> grid-less path.
    x = jax.random.normal(kx, (1, IN_FEATURES), jnp.float32)
    out = jax.block_until_ready(linear_tanh(x, w_bf16, b2d))
    assert out.shape == (1, OUT_FEATURES)
    assert jnp.allclose(out, reference(x), atol=1e-2, rtol=1e-2)

    # 2) Exercise the batched path (batch axis tiled, weight VMEM-resident).
    xb = jax.random.normal(kx2, (512, IN_FEATURES), jnp.float32)
    outb = jax.block_until_ready(linear_tanh(xb, w_bf16, b2d, tm=256))
    assert outb.shape == (512, OUT_FEATURES)
    assert jnp.allclose(outb, reference(xb), atol=1e-2, rtol=1e-2)

    print("KERNEL_OK")
</pallas_src>

<mosaic_0001>
module attributes {stable_mosaic.version = 11 : i64} {
  func.func @linear_tanh_kernel(%arg0: memref<1x784xf32, #tpu.memory_space<vmem>>, %arg1: memref<784x512xbf16, #tpu.memory_space<vmem>>, %arg2: memref<1x512xf32, #tpu.memory_space<vmem>>, %arg3: memref<1x512xf32, #tpu.memory_space<vmem>>) attributes {dimension_semantics = [], scalar_prefetch = 0 : i64, scratch_operands = 0 : i64, tpu.core_type = #tpu.core_type<tc>} {
    %c0 = arith.constant 0 : index
    %c0_0 = arith.constant 0 : index
    %0 = vector.load %arg0[%c0, %c0_0] : memref<1x784xf32, #tpu.memory_space<vmem>>, vector<1x784xf32>
    %c0_1 = arith.constant 0 : index
    %c0_2 = arith.constant 0 : index
    %1 = vector.load %arg1[%c0_1, %c0_2] : memref<784x512xbf16, #tpu.memory_space<vmem>>, vector<784x512xbf16>
    %2 = arith.extf %1 : vector<784x512xbf16> to vector<784x512xf32>
    %cst = arith.constant dense<0.000000e+00> : vector<1x512xf32>
    %3 = tpu.matmul %0, %2, %cst {dimension_numbers = #tpu.dot_dimension_numbers<[1], [0], [0], [1], [0, 0, 1, 1], [], []>} : vector<1x784xf32>, vector<784x512xf32>, vector<1x512xf32> -> vector<1x512xf32>
    %c0_3 = arith.constant 0 : index
    %c0_4 = arith.constant 0 : index
    %4 = vector.load %arg2[%c0_3, %c0_4] : memref<1x512xf32, #tpu.memory_space<vmem>>, vector<1x512xf32>
    %5 = arith.addf %3, %4 : vector<1x512xf32>
    %6 = math.tanh %5 : vector<1x512xf32>
    %c0_5 = arith.constant 0 : index
    %c0_6 = arith.constant 0 : index
    %7 = vector.load %arg3[%c0_5, %c0_6] : memref<1x512xf32, #tpu.memory_space<vmem>>, vector<1x512xf32>
    tpu.vector_store %arg3[%c0_5, %c0_6], %6 {strides = array<i32>} : memref<1x512xf32, #tpu.memory_space<vmem>>, vector<1x512xf32>,
    return
  }
}

</mosaic_0001>

<llo_original>
// kernel: tpu_custom_call.1
$region0: #{tpu_custom_call.1}
  #allocation0 [shape = 'u32[]', space=smem, size = 0x4, offset = 0x4, fixed_abs, tag = 'smem constant byte address 0x4 - core index']
  #allocation1 [shape = 'u32[144,128]{1,0:T(1,128)}', space=vmem, size = 0x12000, scoped, tag = 'internal scratch']
  %s0 = inlined_call_operand.hbm [shape: f32[1,784], index: 0, kind: input, shape index: {}]
  %s1 = inlined_call_operand.hbm [shape: bf16[784,512], index: 1, kind: input, shape index: {}]
  %s2 = inlined_call_operand.vmem [shape: f32[1,512], index: 2, kind: input, shape index: {}]
  %s3 = inlined_call_operand.hbm [shape: f32[1,512], index: 3, kind: output, shape index: {}]
  %s4 = sld [smem:[#allocation0]]
  $region30: #{tpu_custom_call.1} parent=0
    _
  %s6 = ssub.s32 1, %s4
  %s7 = scalar_select 0, %s6, %s4
  $region1: #{tpu_custom_call.1} parent=0
    #allocation2 [shape = 'u8[3584]{0}', space=vmem, size = 0x1000, scoped, tag = 'input window, operand 0, single buffered']
    #allocation3 [shape = 's32[1]{0}', space=sflag, size = 0x4, scoped, tag = 'scoped memory for tpu_custom_call.1']
    #allocation4 [shape = 's32[1]{0}', space=sflag, size = 0x4, scoped, tag = 'scoped memory for tpu_custom_call.1']
    #allocation5 [shape = 'u8[802816]{0}', space=vmem, size = 0xc4000, scoped, tag = 'input window, operand 1, single buffered']
    #allocation6 [shape = 's32[1]{0}', space=sflag, size = 0x4, scoped, tag = 'scoped memory for tpu_custom_call.1']
    #allocation7 [shape = 'u8[2048]{0}', space=vmem, size = 0x800, scoped, tag = 'output window, operand 0, single buffered']
    %8 = vsyncpa [#allocation3], 0
    %9 = vsyncpa [#allocation6], 0
    %10 = vsyncpa [#allocation4], 0
    // Predicated region
    $region2: #{tpu_custom_call.1} parent=1 // pred_check
      _
    $region3: #{tpu_custom_call.1} parent=1 // pred_check_branch
      %12 = sbr.rel (0) target = $region5
    $region4: #{tpu_custom_call.1} parent=1 // pred_region
      %s14 = ssub.s32 112, 112
      %15 = vsyncadd [#allocation3], %s14
      %s17 = sshll.u32 [#allocation2], 4
      %s18 = int_to_ptr.vmem [resolvable:$true] %s17
      %20 = dma.hbm_to_vmem [thread:$0]  %s0, 112, %s18, [#allocation3]
    $region5: #{tpu_custom_call.1} parent=1 // pred_fallthru
      _
    // Predicated region
    $region6: #{tpu_custom_call.1} parent=1 // pred_check
      _
    $region7: #{tpu_custom_call.1} parent=1 // pred_check_branch
      %22 = sbr.rel (0) target = $region9
    $region8: #{tpu_custom_call.1} parent=1 // pred_region
      %s24 = ssub.s32 25088, 25088
      %25 = vsyncadd [#allocation6], %s24
      %s26 = sshll.u32 [#allocation5], 4
      %s27 = int_to_ptr.vmem [resolvable:$true] %s26
      %32 = dma.hbm_to_vmem [thread:$0]  %s1, 25088, %s27, [#allocation6], 256, 256, 16
    $region9: #{tpu_custom_call.1} parent=1 // pred_fallthru
      _
    // Predicated region
    $region10: #{tpu_custom_call.1} parent=1 // pred_check
      _
    $region11: #{tpu_custom_call.1} parent=1 // pred_check_branch
      %34 = sbr.rel (0) target = $region13
    $region12: #{tpu_custom_call.1} parent=1 // pred_region
      _
    $region13: #{tpu_custom_call.1} parent=1 // pred_fallthru
      _
    // Predicated region
    $region14: #{tpu_custom_call.1} parent=1 // pred_check
      _
    $region15: #{tpu_custom_call.1} parent=1 // pred_check_branch
      %36 = sbr.rel (0) target = $region17
    $region16: #{tpu_custom_call.1} parent=1 // pred_region
      %37 = dma.done [#allocation3], 112
    $region17: #{tpu_custom_call.1} parent=1 // pred_fallthru
      _
    // Predicated region
    $region18: #{tpu_custom_call.1} parent=1 // pred_check
      _
    $region19: #{tpu_custom_call.1} parent=1 // pred_check_branch
      %39 = sbr.rel (0) target = $region21
    $region20: #{tpu_custom_call.1} parent=1 // pred_region
      %40 = dma.done [#allocation6], 25088
    $region21: #{tpu_custom_call.1} parent=1 // pred_fallthru
      _
    %v41 = vld [vmem:[#allocation2] sm:$0x7f]
    %v42 = vld [vmem:[#allocation5] sm:$0xff]
    %v43 = vld [vmem:[#allocation5 + $0x8] sm:$0xff]
    %v44 = vld [vmem:[#allocation5 + $0x10] sm:$0xff]
    %v45 = vld [vmem:[#allocation5 + $0x18] sm:$0xff]
    %v46 = vld [vmem:[#allocation5 + $0x20] sm:$0xff]
    %v47 = vld [vmem:[#allocation5 + $0x28] sm:$0xff]
    %v48 = vld [vmem:[#allocation5 + $0x30] sm:$0xff]
    %v49 = vld [vmem:[#allocation5 + $0x38] sm:$0xff]
    %v50 = vld [vmem:[#allocation5 + $0x40] sm:$0xff]
    %v51 = vld [vmem:[#allocation5 + $0x48] sm:$0xff]
    %v52 = vld [vmem:[#allocation5 + $0x50] sm:$0xff]
    %v53 = vld [vmem:[#allocation5 + $0x58] sm:$0xff]
    %v54 = vld [vmem:[#allocation5 + $0x60] sm:$0xff]
    %v55 = vld [vmem:[#allocation5 + $0x68] sm:$0xff]
    %v56 = vld [vmem:[#allocation5 + $0x70] sm:$0xff]
    %v57 = vld [vmem:[#allocation5 + $0x78] sm:$0xff]
    %v58 = vld [vmem:[#allocation5 + $0x80] sm:$0xff]
    %v59 = vld [vmem:[#allocation5 + $0x88] sm:$0xff]
    %v60 = vld [vmem:[#allocation5 + $0x90] sm:$0xff]
    %v61 = vld [vmem:[#allocation5 + $0x98] sm:$0xff]
    %v62 = vld [vmem:[#allocation5 + $0xa0] sm:$0xff]
    %v63 = vld [vmem:[#allocation5 + $0xa8] sm:$0xff]
    %v64 = vld [vmem:[#allocation5 + $0xb0] sm:$0xff]
    %v65 = vld [vmem:[#allocation5 + $0xb8] sm:$0xff]
    %v66 = vld [vmem:[#allocation5 + $0xc0] sm:$0xff]
    %v67 = vld [vmem:[#allocation5 + $0xc8] sm:$0xff]
    %v68 = vld [vmem:[#allocation5 + $0xd0] sm:$0xff]
    %v69 = vld [vmem:[#allocation5 + $0xd8] sm:$0xff]
    %v70 = vld [vmem:[#allocation5 + $0xe0] sm:$0xff]
    %v71 = vld [vmem:[#allocation5 + $0xe8] sm:$0xff]
    %v72 = vld [vmem:[#allocation5 + $0xf0] sm:$0xff]
    %v73 = vld [vmem:[#allocation5 + $0xf8] sm:$0xff]
    %v74 = vld [vmem:[#allocation5 + $0x100] sm:$0xff]
    %v75 = vld [vmem:[#allocation5 + $0x108] sm:$0xff]
    %v76 = vld [vmem:[#allocation5 + $0x110] sm:$0xff]
    %v77 = vld [vmem:[#allocation5 + $0x118] sm:$0xff]
    %v78 = vld [vmem:[#allocation5 + $0x120] sm:$0xff]
    %v79 = vld [vmem:[#allocation5 + $0x128] sm:$0xff]
    %v80 = vld [vmem:[#allocation5 + $0x130] sm:$0xff]
    %v81 = vld [vmem:[#allocation5 + $0x138] sm:$0xff]
    %v82 = vld [vmem:[#allocation5 + $0x140] sm:$0xff]
    %v83 = vld [vmem:[#allocation5 + $0x148] sm:$0xff]
    %v84 = vld [vmem:[#allocation5 + $0x150] sm:$0xff]
    %v85 = vld [vmem:[#allocation5 + $0x158] sm:$0xff]
    %v86 = vld [vmem:[#allocation5 + $0x160] sm:$0xff]
    %v87 = vld [vmem:[#allocation5 + $0x168] sm:$0xff]
    %v88 = vld [vmem:[#allocation5 + $0x170] sm:$0xff]
    %v89 = vld [vmem:[#allocation5 + $0x178] sm:$0xff]
    %v90 = vld [vmem:[#allocation5 + $0x180] sm:$0xff]
    %v91 = vld [vmem:[#allocation5 + $0x188] sm:$0xff]
    %v92 = vld [vmem:[#allocation5 + $0x190] sm:$0xff]
    %v93 = vld [vmem:[#allocation5 + $0x198] sm:$0xff]
    %v94 = vld [vmem:[#allocation5 + $0x1a0] sm:$0xff]
    %v95 = vld [vmem:[#allocation5 + $0x1a8] sm:$0xff]
    %v96 = vld [vmem:[#allocation5 + $0x1b0] sm:$0xff]
    %v97 = vld [vmem:[#allocation5 + $0x1b8] sm:$0xff]
    %v98 = vld [vmem:[#allocation5 + $0x1c0] sm:$0xff]
    %v99 = vld [vmem:[#allocation5 + $0x1c8] sm:$0xff]
    %v100 = vld [vmem:[#allocation5 + $0x1d0] sm:$0xff]
    %v101 = vld [vmem:[#allocation5 + $0x1d8] sm:$0xff]
    %v102 = vld [vmem:[#allocation5 + $0x1e0] sm:$0xff]
    %v103 = vld [vmem:[#allocation5 + $0x1e8] sm:$0xff]
    %v104 = vld [vmem:[#allocation5 + $0x1f0] sm:$0xff]
    %v105 = vld [vmem:[#allocation5 + $0x1f8] sm:$0xff]
    %v106 = vld [vmem:[#allocation5 + $0x200] sm:$0xff]
    %v107 = vld [vmem:[#allocation5 + $0x208] sm:$0xff]
    %v108 = vld [vmem:[#allocation5 + $0x210] sm:$0xff]
    %v109 = vld [vmem:[#allocation5 + $0x218] sm:$0xff]
    %v110 = vld [vmem:[#allocation5 + $0x220] sm:$0xff]
    %v111 = vld [vmem:[#allocation5 + $0x228] sm:$0xff]
    %v112 = vld [vmem:[#allocation5 + $0x230] sm:$0xff]
    %v113 = vld [vmem:[#allocation5 + $0x238] sm:$0xff]
    %v114 = vld [vmem:[#allocation5 + $0x240] sm:$0xff]
    %v115 = vld [vmem:[#allocation5 + $0x248] sm:$0xff]
    %v116 = vld [vmem:[#allocation5 + $0x250] sm:$0xff]
    %v117 = vld [vmem:[#allocation5 + $0x258] sm:$0xff]
    %v118 = vld [vmem:[#allocation5 + $0x260] sm:$0xff]
    %v119 = vld [vmem:[#allocation5 + $0x268] sm:$0xff]
    %v120 = vld [vmem:[#allocation5 + $0x270] sm:$0xff]
    %v121 = vld [vmem:[#allocation5 + $0x278] sm:$0xff]
    %v122 = vld [vmem:[#allocation5 + $0x280] sm:$0xff]
    %v123 = vld [vmem:[#allocation5 + $0x288] sm:$0xff]
    %v124 = vld [vmem:[#allocation5 + $0x290] sm:$0xff]
    %v125 = vld [vmem:[#allocation5 + $0x298] sm:$0xff]
    %v126 = vld [vmem:[#allocation5 + $0x2a0] sm:$0xff]
    %v127 = vld [vmem:[#allocation5 + $0x2a8] sm:$0xff]
    %v128 = vld [vmem:[#allocation5 + $0x2b0] sm:$0xff]
    %v129 = vld [vmem:[#allocation5 + $0x2b8] sm:$0xff]
    %v130 = vld [vmem:[#allocation5 + $0x2c0] sm:$0xff]
    %v131 = vld [vmem:[#allocation5 + $0x2c8] sm:$0xff]
    %v132 = vld [vmem:[#allocation5 + $0x2d0] sm:$0xff]
    %v133 = vld [vmem:[#allocation5 + $0x2d8] sm:$0xff]
    %v134 = vld [vmem:[#allocation5 + $0x2e0] sm:$0xff]
    %v135 = vld [vmem:[#allocation5 + $0x2e8] sm:$0xff]
    %v136 = vld [vmem:[#allocation5 + $0x2f0] sm:$0xff]
    %v137 = vld [vmem:[#allocation5 + $0x2f8] sm:$0xff]
    %v138 = vld [vmem:[#allocation5 + $0x300] sm:$0xff]
    %v139 = vld [vmem:[#allocation5 + $0x308] sm:$0xff]
    %v140 = vld [vmem:[#allocation5 + $0x310] sm:$0xff]
    %v141 = vld [vmem:[#allocation5 + $0x318] sm:$0xff]
    %v142 = vld [vmem:[#allocation5 + $0x320] sm:$0xff]
    %v143 = vld [vmem:[#allocation5 + $0x328] sm:$0xff]
    %v144 = vld [vmem:[#allocation5 + $0x330] sm:$0xff]
    %v145 = vld [vmem:[#allocation5 + $0x338] sm:$0xff]
    %v146 = vld [vmem:[#allocation5 + $0x340] sm:$0xff]
    %v147 = vld [vmem:[#allocation5 + $0x348] sm:$0xff]
    %v148 = vld [vmem:[#allocation5 + $0x350] sm:$0xff]
    %v149 = vld [vmem:[#allocation5 + $0x358] sm:$0xff]
    %v150 = vld [vmem:[#allocation5 + $0x360] sm:$0xff]
    %v151 = vld [vmem:[#allocation5 + $0x368] sm:$0xff]
    %v152 = vld [vmem:[#allocation5 + $0x370] sm:$0xff]
    %v153 = vld [vmem:[#allocation5 + $0x378] sm:$0xff]
    %v154 = vld [vmem:[#allocation5 + $0x380] sm:$0xff]
    %v155 = vld [vmem:[#allocation5 + $0x388] sm:$0xff]
    %v156 = vld [vmem:[#allocation5 + $0x390] sm:$0xff]
    %v157 = vld [vmem:[#allocation5 + $0x398] sm:$0xff]
    %v158 = vld [vmem:[#allocation5 + $0x3a0] sm:$0xff]
    %v159 = vld [vmem:[#allocation5 + $0x3a8] sm:$0xff]
    %v160 = vld [vmem:[#allocation5 + $0x3b0] sm:$0xff]
    %v161 = vld [vmem:[#allocation5 + $0x3b8] sm:$0xff]
    %v162 = vld [vmem:[#allocation5 + $0x3c0] sm:$0xff]
    %v163 = vld [vmem:[#allocation5 + $0x3c8] sm:$0xff]
    %v164 = vld [vmem:[#allocation5 + $0x3d0] sm:$0xff]
    %v165 = vld [vmem:[#allocation5 + $0x3d8] sm:$0xff]
    %v166 = vld [vmem:[#allocation5 + $0x3e0] sm:$0xff]
    %v167 = vld [vmem:[#allocation5 + $0x3e8] sm:$0xff]
    %v168 = vld [vmem:[#allocation5 + $0x3f0] sm:$0xff]
    %v169 = vld [vmem:[#allocation5 + $0x3f8] sm:$0xff]
    %v170 = vld [vmem:[#allocation5 + $0x400] sm:$0xff]
    %v171 = vld [vmem:[#allocation5 + $0x408] sm:$0xff]
    %v172 = vld [vmem:[#allocation5 + $0x410] sm:$0xff]
    %v173 = vld [vmem:[#allocation5 + $0x418] sm:$0xff]
    %v174 = vld [vmem:[#allocation5 + $0x420] sm:$0xff]
    %v175 = vld [vmem:[#allocation5 + $0x428] sm:$0xff]
    %v176 = vld [vmem:[#allocation5 + $0x430] sm:$0xff]
    %v177 = vld [vmem:[#allocation5 + $0x438] sm:$0xff]
    %v178 = vld [vmem:[#allocation5 + $0x440] sm:$0xff]
    %v179 = vld [vmem:[#allocation5 + $0x448] sm:$0xff]
    %v180 = vld [vmem:[#allocation5 + $0x450] sm:$0xff]
    %v181 = vld [vmem:[#allocation5 + $0x458] sm:$0xff]
    %v182 = vld [vmem:[#allocation5 + $0x460] sm:$0xff]
    %v183 = vld [vmem:[#allocation5 + $0x468] sm:$0xff]
    %v184 = vld [vmem:[#allocation5 + $0x470] sm:$0xff]
    %v185 = vld [vmem:[#allocation5 + $0x478] sm:$0xff]
    %v186 = vld [vmem:[#allocation5 + $0x480] sm:$0xff]
    %v187 = vld [vmem:[#allocation5 + $0x488] sm:$0xff]
    %v188 = vld [vmem:[#allocation5 + $0x490] sm:$0xff]
    %v189 = vld [vmem:[#allocation5 + $0x498] sm:$0xff]
    %v190 = vld [vmem:[#allocation5 + $0x4a0] sm:$0xff]
    %v191 = vld [vmem:[#allocation5 + $0x4a8] sm:$0xff]
    %v192 = vld [vmem:[#allocation5 + $0x4b0] sm:$0xff]
    %v193 = vld [vmem:[#allocation5 + $0x4b8] sm:$0xff]
    %v194 = vld [vmem:[#allocation5 + $0x4c0] sm:$0xff]
    %v195 = vld [vmem:[#allocation5 + $0x4c8] sm:$0xff]
    %v196 = vld [vmem:[#allocation5 + $0x4d0] sm:$0xff]
    %v197 = vld [vmem:[#allocation5 + $0x4d8] sm:$0xff]
    %v198 = vld [vmem:[#allocation5 + $0x4e0] sm:$0xff]
    %v199 = vld [vmem:[#allocation5 + $0x4e8] sm:$0xff]
    %v200 = vld [vmem:[#allocation5 + $0x4f0] sm:$0xff]
    %v201 = vld [vmem:[#allocation5 + $0x4f8] sm:$0xff]
    %v202 = vld [vmem:[#allocation5 + $0x500] sm:$0xff]
    %v203 = vld [vmem:[#allocation5 + $0x508] sm:$0xff]
    %v204 = vld [vmem:[#allocation5 + $0x510] sm:$0xff]
    %v205 = vld [vmem:[#allocation5 + $0x518] sm:$0xff]
    %v206 = vld [vmem:[#allocation5 + $0x520] sm:$0xff]
    %v207 = vld [vmem:[#allocation5 + $0x528] sm:$0xff]
    %v208 = vld [vmem:[#allocation5 + $0x530] sm:$0xff]
    %v209 = vld [vmem:[#allocation5 + $0x538] sm:$0xff]
    %v210 = vld [vmem:[#allocation5 + $0x540] sm:$0xff]
    %v211 = vld [vmem:[#allocation5 + $0x548] sm:$0xff]
    %v212 = vld [vmem:[#allocation5 + $0x550] sm:$0xff]
    %v213 = vld [vmem:[#allocation5 + $0x558] sm:$0xff]
    %v214 = vld [vmem:[#allocation5 + $0x560] sm:$0xff]
    %v215 = vld [vmem:[#allocation5 + $0x568] sm:$0xff]
    %v216 = vld [vmem:[#allocation5 + $0x570] sm:$0xff]
    %v217 = vld [vmem:[#allocation5 + $0x578] sm:$0xff]
    %v218 = vld [vmem:[#allocation5 + $0x580] sm:$0xff]
    %v219 = vld [vmem:[#allocation5 + $0x588] sm:$0xff]
    %v220 = vld [vmem:[#allocation5 + $0x590] sm:$0xff]
    %v221 = vld [vmem:[#allocation5 + $0x598] sm:$0xff]
    %v222 = vld [vmem:[#allocation5 + $0x5a0] sm:$0xff]
    %v223 = vld [vmem:[#allocation5 + $0x5a8] sm:$0xff]
    %v224 = vld [vmem:[#allocation5 + $0x5b0] sm:$0xff]
    %v225 = vld [vmem:[#allocation5 + $0x5b8] sm:$0xff]
    %v226 = vld [vmem:[#allocation5 + $0x5c0] sm:$0xff]
    %v227 = vld [vmem:[#allocation5 + $0x5c8] sm:$0xff]
    %v228 = vld [vmem:[#allocation5 + $0x5d0] sm:$0xff]
    %v229 = vld [vmem:[#allocation5 + $0x5d8] sm:$0xff]
    %v230 = vld [vmem:[#allocation5 + $0x5e0] sm:$0xff]
    %v231 = vld [vmem:[#allocation5 + $0x5e8] sm:$0xff]
    %v232 = vld [vmem:[#allocation5 + $0x5f0] sm:$0xff]
    %v233 = vld [vmem:[#allocation5 + $0x5f8] sm:$0xff]
    %v234 = vld [vmem:[#allocation5 + $0x600] sm:$0xff]
    %v235 = vld [vmem:[#allocation5 + $0x608] sm:$0xff]
    %v236 = vld [vmem:[#allocation5 + $0x610] sm:$0xff]
    %v237 = vld [vmem:[#allocation5 + $0x618] sm:$0xff]
    %v238 = vunpack.c.l.bf16 %v42
    %v239 = vunpack.c.h.bf16 %v42
    %v240 = vunpack.c.l.bf16 %v43
    %v241 = vunpack.c.h.bf16 %v43
    %v242 = vunpack.c.l.bf16 %v44
    %v243 = vunpack.c.h.bf16 %v44
    %v244 = vunpack.c.l.bf16 %v45
    %v245 = vunpack.c.h.bf16 %v45
    %v246 = vunpack.c.l.bf16 %v46
    %v247 = vunpack.c.h.bf16 %v46
    %v248 = vunpack.c.l.bf16 %v47
    %v249 = vunpack.c.h.bf16 %v47
    %v250 = vunpack.c.l.bf16 %v48
    %v251 = vunpack.c.h.bf16 %v48
    %v252 = vunpack.c.l.bf16 %v49
    %v253 = vunpack.c.h.bf16 %v49
    %v254 = vunpack.c.l.bf16 %v50
    %v255 = vunpack.c.h.bf16 %v50
    %v256 = vunpack.c.l.bf16 %v51
    %v257 = vunpack.c.h.bf16 %v51
    %v258 = vunpack.c.l.bf16 %v52
    %v259 = vunpack.c.h.bf16 %v52
    %v260 = vunpack.c.l.bf16 %v53
    %v261 = vunpack.c.h.bf16 %v53
    %v262 = vunpack.c.l.bf16 %v54
    %v263 = vunpack.c.h.bf16 %v54
    %v264 = vunpack.c.l.bf16 %v55
    %v265 = vunpack.c.h.bf16 %v55
    %v266 = vunpack.c.l.bf16 %v56
    %v267 = vunpack.c.h.bf16 %v56
    %v268 = vunpack.c.l.bf16 %v57
    %v269 = vunpack.c.h.bf16 %v57
    %v270 = vunpack.c.l.bf16 %v58
    %v271 = vunpack.c.h.bf16 %v58
    %v272 = vunpack.c.l.bf16 %v59
    %v273 = vunpack.c.h.bf16 %v59
    %v274 = vunpack.c.l.bf16 %v60
    %v275 = vunpack.c.h.bf16 %v60
    %v276 = vunpack.c.l.bf16 %v61
    %v277 = vunpack.c.h.bf16 %v61
    %v278 = vunpack.c.l.bf16 %v62
    %v279 = vunpack.c.h.bf16 %v62
    %v280 = vunpack.c.l.bf16 %v63
    %v281 = vunpack.c.h.bf16 %v63
    %v282 = vunpack.c.l.bf16 %v64
    %v283 = vunpack.c.h.bf16 %v64
    %v284 = vunpack.c.l.bf16 %v65
    %v285 = vunpack.c.h.bf16 %v65
    %v286 = vunpack.c.l.bf16 %v66
    %v287 = vunpack.c.h.bf16 %v66
    %v288 = vunpack.c.l.bf16 %v67
    %v289 = vunpack.c.h.bf16 %v67
    %v290 = vunpack.c.l.bf16 %v68
    %v291 = vunpack.c.h.bf16 %v68
    %v292 = vunpack.c.l.bf16 %v69
    %v293 = vunpack.c.h.bf16 %v69
    %v294 = vunpack.c.l.bf16 %v70
    %v295 = vunpack.c.h.bf16 %v70
    %v296 = vunpack.c.l.bf16 %v71
    %v297 = vunpack.c.h.bf16 %v71
    %v298 = vunpack.c.l.bf16 %v72
    %v299 = vunpack.c.h.bf16 %v72
    %v300 = vunpack.c.l.bf16 %v73
    %v301 = vunpack.c.h.bf16 %v73
    %v302 = vunpack.c.l.bf16 %v74
    %v303 = vunpack.c.h.bf16 %v74
    %v304 = vunpack.c.l.bf16 %v75
    %v305 = vunpack.c.h.bf16 %v75
    %v306 = vunpack.c.l.bf16 %v76
    %v307 = vunpack.c.h.bf16 %v76
    %v308 = vunpack.c.l.bf16 %v77
    %v309 = vunpack.c.h.bf16 %v77
    %v310 = vunpack.c.l.bf16 %v78
    %v311 = vunpack.c.h.bf16 %v78
    %v312 = vunpack.c.l.bf16 %v79
    %v313 = vunpack.c.h.bf16 %v79
    %v314 = vunpack.c.l.bf16 %v80
    %v315 = vunpack.c.h.bf16 %v80
    %v316 = vunpack.c.l.bf16 %v81
    %v317 = vunpack.c.h.bf16 %v81
    %v318 = vunpack.c.l.bf16 %v82
    %v319 = vunpack.c.h.bf16 %v82
    %v320 = vunpack.c.l.bf16 %v83
    %v321 = vunpack.c.h.bf16 %v83
    %v322 = vunpack.c.l.bf16 %v84
    %v323 = vunpack.c.h.bf16 %v84
    %v324 = vunpack.c.l.bf16 %v85
    %v325 = vunpack.c.h.bf16 %v85
    %v326 = vunpack.c.l.bf16 %v86
    %v327 = vunpack.c.h.bf16 %v86
    %v328 = vunpack.c.l.bf16 %v87
    %v329 = vunpack.c.h.bf16 %v87
    %v330 = vunpack.c.l.bf16 %v88
    %v331 = vunpack.c.h.bf16 %v88
    %v332 = vunpack.c.l.bf16 %v89
    %v333 = vunpack.c.h.bf16 %v89
    %v334 = vunpack.c.l.bf16 %v90
    %v335 = vunpack.c.h.bf16 %v90
    %v336 = vunpack.c.l.bf16 %v91
    %v337 = vunpack.c.h.bf16 %v91
    %v338 = vunpack.c.l.bf16 %v92
    %v339 = vunpack.c.h.bf16 %v92
    %v340 = vunpack.c.l.bf16 %v93
    %v341 = vunpack.c.h.bf16 %v93
    %v342 = vunpack.c.l.bf16 %v94
    %v343 = vunpack.c.h.bf16 %v94
    %v344 = vunpack.c.l.bf16 %v95
    %v345 = vunpack.c.h.bf16 %v95
    %v346 = vunpack.c.l.bf16 %v96
    %v347 = vunpack.c.h.bf16 %v96
    %v348 = vunpack.c.l.bf16 %v97
    %v349 = vunpack.c.h.bf16 %v97
    %v350 = vunpack.c.l.bf16 %v98
    %v351 = vunpack.c.h.bf16 %v98
    %v352 = vunpack.c.l.bf16 %v99
    %v353 = vunpack.c.h.bf16 %v99
    %v354 = vunpack.c.l.bf16 %v100
    %v355 = vunpack.c.h.bf16 %v100
    %v356 = vunpack.c.l.bf16 %v101
    %v357 = vunpack.c.h.bf16 %v101
    %v358 = vunpack.c.l.bf16 %v102
    %v359 = vunpack.c.h.bf16 %v102
    %v360 = vunpack.c.l.bf16 %v103
    %v361 = vunpack.c.h.bf16 %v103
    %v362 = vunpack.c.l.bf16 %v104
    %v363 = vunpack.c.h.bf16 %v104
    %v364 = vunpack.c.l.bf16 %v105
    %v365 = vunpack.c.h.bf16 %v105
    %v366 = vunpack.c.l.bf16 %v106
    %v367 = vunpack.c.h.bf16 %v106
    %v368 = vunpack.c.l.bf16 %v107
    %v369 = vunpack.c.h.bf16 %v107
    %v370 = vunpack.c.l.bf16 %v108
    %v371 = vunpack.c.h.bf16 %v108
    %v372 = vunpack.c.l.bf16 %v109
    %v373 = vunpack.c.h.bf16 %v109
    %v374 = vunpack.c.l.bf16 %v110
    %v375 = vunpack.c.h.bf16 %v110
    %v376 = vunpack.c.l.bf16 %v111
    %v377 = vunpack.c.h.bf16 %v111
    %v378 = vunpack.c.l.bf16 %v112
    %v379 = vunpack.c.h.bf16 %v112
    %v380 = vunpack.c.l.bf16 %v113
    %v381 = vunpack.c.h.bf16 %v113
    %v382 = vunpack.c.l.bf16 %v114
    %v383 = vunpack.c.h.bf16 %v114
    %v384 = vunpack.c.l.bf16 %v115
    %v385 = vunpack.c.h.bf16 %v115
    %v386 = vunpack.c.l.bf16 %v116
    %v387 = vunpack.c.h.bf16 %v116
    %v388 = vunpack.c.l.bf16 %v117
    %v389 = vunpack.c.h.bf16 %v117
    %v390 = vunpack.c.l.bf16 %v118
    %v391 = vunpack.c.h.bf16 %v118
    %v392 = vunpack.c.l.bf16 %v119
    %v393 = vunpack.c.h.bf16 %v119
    %v394 = vunpack.c.l.bf16 %v120
    %v395 = vunpack.c.h.bf16 %v120
    %v396 = vunpack.c.l.bf16 %v121
    %v397 = vunpack.c.h.bf16 %v121
    %v398 = vunpack.c.l.bf16 %v122
    %v399 = vunpack.c.h.bf16 %v122
    %v400 = vunpack.c.l.bf16 %v123
    %v401 = vunpack.c.h.bf16 %v123
    %v402 = vunpack.c.l.bf16 %v124
    %v403 = vunpack.c.h.bf16 %v124
    %v404 = vunpack.c.l.bf16 %v125
    %v405 = vunpack.c.h.bf16 %v125
    %v406 = vunpack.c.l.bf16 %v126
    %v407 = vunpack.c.h.bf16 %v126
    %v408 = vunpack.c.l.bf16 %v127
    %v409 = vunpack.c.h.bf16 %v127
    %v410 = vunpack.c.l.bf16 %v128
    %v411 = vunpack.c.h.bf16 %v128
    %v412 = vunpack.c.l.bf16 %v129
    %v413 = vunpack.c.h.bf16 %v129
    %v414 = vunpack.c.l.bf16 %v130
    %v415 = vunpack.c.h.bf16 %v130
    %v416 = vunpack.c.l.bf16 %v131
    %v417 = vunpack.c.h.bf16 %v131
    %v418 = vunpack.c.l.bf16 %v132
    %v419 = vunpack.c.h.bf16 %v132
    %v420 = vunpack.c.l.bf16 %v133
    %v421 = vunpack.c.h.bf16 %v133
    %v422 = vunpack.c.l.bf16 %v134
    %v423 = vunpack.c.h.bf16 %v134
    %v424 = vunpack.c.l.bf16 %v135
    %v425 = vunpack.c.h.bf16 %v135
    %v426 = vunpack.c.l.bf16 %v136
    %v427 = vunpack.c.h.bf16 %v136
    %v428 = vunpack.c.l.bf16 %v137
    %v429 = vunpack.c.h.bf16 %v137
    %v430 = vunpack.c.l.bf16 %v138
    %v431 = vunpack.c.h.bf16 %v138
    %v432 = vunpack.c.l.bf16 %v139
    %v433 = vunpack.c.h.bf16 %v139
    %v434 = vunpack.c.l.bf16 %v140
    %v435 = vunpack.c.h.bf16 %v140
    %v436 = vunpack.c.l.bf16 %v141
    %v437 = vunpack.c.h.bf16 %v141
    %v438 = vunpack.c.l.bf16 %v142
    %v439 = vunpack.c.h.bf16 %v142
    %v440 = vunpack.c.l.bf16 %v143
    %v441 = vunpack.c.h.bf16 %v143
    %v442 = vunpack.c.l.bf16 %v144
    %v443 = vunpack.c.h.bf16 %v144
    %v444 = vunpack.c.l.bf16 %v145
    %v445 = vunpack.c.h.bf16 %v145
    %v446 = vunpack.c.l.bf16 %v146
    %v447 = vunpack.c.h.bf16 %v146
    %v448 = vunpack.c.l.bf16 %v147
    %v449 = vunpack.c.h.bf16 %v147
    %v450 = vunpack.c.l.bf16 %v148
    %v451 = vunpack.c.h.bf16 %v148
    %v452 = vunpack.c.l.bf16 %v149
    %v453 = vunpack.c.h.bf16 %v149
    %v454 = vunpack.c.l.bf16 %v150
    %v455 = vunpack.c.h.bf16 %v150
    %v456 = vunpack.c.l.bf16 %v151
    %v457 = vunpack.c.h.bf16 %v151
    %v458 = vunpack.c.l.bf16 %v152
    %v459 = vunpack.c.h.bf16 %v152
    %v460 = vunpack.c.l.bf16 %v153
    %v461 = vunpack.c.h.bf16 %v153
    %v462 = vunpack.c.l.bf16 %v154
    %v463 = vunpack.c.h.bf16 %v154
    %v464 = vunpack.c.l.bf16 %v155
    %v465 = vunpack.c.h.bf16 %v155
    %v466 = vunpack.c.l.bf16 %v156
    %v467 = vunpack.c.h.bf16 %v156
    %v468 = vunpack.c.l.bf16 %v157
    %v469 = vunpack.c.h.bf16 %v157
    %v470 = vunpack.c.l.bf16 %v158
    %v471 = vunpack.c.h.bf16 %v158
    %v472 = vunpack.c.l.bf16 %v159
    %v473 = vunpack.c.h.bf16 %v159
    %v474 = vunpack.c.l.bf16 %v160
    %v475 = vunpack.c.h.bf16 %v160
    %v476 = vunpack.c.l.bf16 %v161
    %v477 = vunpack.c.h.bf16 %v161
    %v478 = vunpack.c.l.bf16 %v162
    %v479 = vunpack.c.h.bf16 %v162
    %v480 = vunpack.c.l.bf16 %v163
    %v481 = vunpack.c.h.bf16 %v163
    %v482 = vunpack.c.l.bf16 %v164
    %v483 = vunpack.c.h.bf16 %v164
    %v484 = vunpack.c.l.bf16 %v165
    %v485 = vunpack.c.h.bf16 %v165
    %v486 = vunpack.c.l.bf16 %v166
    %v487 = vunpack.c.h.bf16 %v166
    %v488 = vunpack.c.l.bf16 %v167
    %v489 = vunpack.c.h.bf16 %v167
    %v490 = vunpack.c.l.bf16 %v168
    %v491 = vunpack.c.h.bf16 %v168
    %v492 = vunpack.c.l.bf16 %v169
    %v493 = vunpack.c.h.bf16 %v169
    %v494 = vunpack.c.l.bf16 %v170
    %v495 = vunpack.c.h.bf16 %v170
    %v496 = vunpack.c.l.bf16 %v171
    %v497 = vunpack.c.h.bf16 %v171
    %v498 = vunpack.c.l.bf16 %v172
    %v499 = vunpack.c.h.bf16 %v172
    %v500 = vunpack.c.l.bf16 %v173
    %v501 = vunpack.c.h.bf16 %v173
    %v502 = vunpack.c.l.bf16 %v174
    %v503 = vunpack.c.h.bf16 %v174
    %v504 = vunpack.c.l.bf16 %v175
    %v505 = vunpack.c.h.bf16 %v175
    %v506 = vunpack.c.l.bf16 %v176
    %v507 = vunpack.c.h.bf16 %v176
    %v508 = vunpack.c.l.bf16 %v177
    %v509 = vunpack.c.h.bf16 %v177
    %v510 = vunpack.c.l.bf16 %v178
    %v511 = vunpack.c.h.bf16 %v178
    %v512 = vunpack.c.l.bf16 %v179
    %v513 = vunpack.c.h.bf16 %v179
    %v514 = vunpack.c.l.bf16 %v180
    %v515 = vunpack.c.h.bf16 %v180
    %v516 = vunpack.c.l.bf16 %v181
    %v517 = vunpack.c.h.bf16 %v181
    %v518 = vunpack.c.l.bf16 %v182
    %v519 = vunpack.c.h.bf16 %v182
    %v520 = vunpack.c.l.bf16 %v183
    %v521 = vunpack.c.h.bf16 %v183
    %v522 = vunpack.c.l.bf16 %v184
    %v523 = vunpack.c.h.bf16 %v184
    %v524 = vunpack.c.l.bf16 %v185
    %v525 = vunpack.c.h.bf16 %v185
    %v526 = vunpack.c.l.bf16 %v186
    %v527 = vunpack.c.h.bf16 %v186
    %v528 = vunpack.c.l.bf16 %v187
    %v529 = vunpack.c.h.bf16 %v187
    %v530 = vunpack.c.l.bf16 %v188
    %v531 = vunpack.c.h.bf16 %v188
    %v532 = vunpack.c.l.bf16 %v189
    %v533 = vunpack.c.h.bf16 %v189
    %v534 = vunpack.c.l.bf16 %v190
    %v535 = vunpack.c.h.bf16 %v190
    %v536 = vunpack.c.l.bf16 %v191
    %v537 = vunpack.c.h.bf16 %v191
    %v538 = vunpack.c.l.bf16 %v192
    %v539 = vunpack.c.h.bf16 %v192
    %v540 = vunpack.c.l.bf16 %v193
    %v541 = vunpack.c.h.bf16 %v193
    %v542 = vunpack.c.l.bf16 %v194
    %v543 = vunpack.c.h.bf16 %v194
    %v544 = vunpack.c.l.bf16 %v195
    %v545 = vunpack.c.h.bf16 %v195
    %v546 = vunpack.c.l.bf16 %v196
    %v547 = vunpack.c.h.bf16 %v196
    %v548 = vunpack.c.l.bf16 %v197
    %v549 = vunpack.c.h.bf16 %v197
    %v550 = vunpack.c.l.bf16 %v198
    %v551 = vunpack.c.h.bf16 %v198
    %v552 = vunpack.c.l.bf16 %v199
    %v553 = vunpack.c.h.bf16 %v199
    %v554 = vunpack.c.l.bf16 %v200
    %v555 = vunpack.c.h.bf16 %v200
    %v556 = vunpack.c.l.bf16 %v201
    %v557 = vunpack.c.h.bf16 %v201
    %v558 = vunpack.c.l.bf16 %v202
    %v559 = vunpack.c.h.bf16 %v202
    %v560 = vunpack.c.l.bf16 %v203
    %v561 = vunpack.c.h.bf16 %v203
    %v562 = vunpack.c.l.bf16 %v204
    %v563 = vunpack.c.h.bf16 %v204
    %v564 = vunpack.c.l.bf16 %v205
    %v565 = vunpack.c.h.bf16 %v205
    %v566 = vunpack.c.l.bf16 %v206
    %v567 = vunpack.c.h.bf16 %v206
    %v568 = vunpack.c.l.bf16 %v207
    %v569 = vunpack.c.h.bf16 %v207
    %v570 = vunpack.c.l.bf16 %v208
    %v571 = vunpack.c.h.bf16 %v208
    %v572 = vunpack.c.l.bf16 %v209
    %v573 = vunpack.c.h.bf16 %v209
    %v574 = vunpack.c.l.bf16 %v210
    %v575 = vunpack.c.h.bf16 %v210
    %v576 = vunpack.c.l.bf16 %v211
    %v577 = vunpack.c.h.bf16 %v211
    %v578 = vunpack.c.l.bf16 %v212
    %v579 = vunpack.c.h.bf16 %v212
    %v580 = vunpack.c.l.bf16 %v213
    %v581 = vunpack.c.h.bf16 %v213
    %v582 = vunpack.c.l.bf16 %v214
    %v583 = vunpack.c.h.bf16 %v214
    %v584 = vunpack.c.l.bf16 %v215
    %v585 = vunpack.c.h.bf16 %v215
    %v586 = vunpack.c.l.bf16 %v216
    %v587 = vunpack.c.h.bf16 %v216
    %v588 = vunpack.c.l.bf16 %v217
    %v589 = vunpack.c.h.bf16 %v217
    %v590 = vunpack.c.l.bf16 %v218
    %v591 = vunpack.c.h.bf16 %v218
    %v592 = vunpack.c.l.bf16 %v219
    %v593 = vunpack.c.h.bf16 %v219
    %v594 = vunpack.c.l.bf16 %v220
    %v595 = vunpack.c.h.bf16 %v220
    %v596 = vunpack.c.l.bf16 %v221
    %v597 = vunpack.c.h.bf16 %v221
    %v598 = vunpack.c.l.bf16 %v222
    %v599 = vunpack.c.h.bf16 %v222
    %v600 = vunpack.c.l.bf16 %v223
    %v601 = vunpack.c.h.bf16 %v223
    %v602 = vunpack.c.l.bf16 %v224
    %v603 = vunpack.c.h.bf16 %v224
    %v604 = vunpack.c.l.bf16 %v225
    %v605 = vunpack.c.h.bf16 %v225
    %v606 = vunpack.c.l.bf16 %v226
    %v607 = vunpack.c.h.bf16 %v226
    %v608 = vunpack.c.l.bf16 %v227
    %v609 = vunpack.c.h.bf16 %v227
    %v610 = vunpack.c.l.bf16 %v228
    %v611 = vunpack.c.h.bf16 %v228
    %v612 = vunpack.c.l.bf16 %v229
    %v613 = vunpack.c.h.bf16 %v229
    %v614 = vunpack.c.l.bf16 %v230
    %v615 = vunpack.c.h.bf16 %v230
    %v616 = vunpack.c.l.bf16 %v231
    %v617 = vunpack.c.h.bf16 %v231
    %v618 = vunpack.c.l.bf16 %v232
    %v619 = vunpack.c.h.bf16 %v232
    %v620 = vunpack.c.l.bf16 %v233
    %v621 = vunpack.c.h.bf16 %v233
    %v622 = vunpack.c.l.bf16 %v234
    %v623 = vunpack.c.h.bf16 %v234
    %v624 = vunpack.c.l.bf16 %v235
    %v625 = vunpack.c.h.bf16 %v235
    %v626 = vunpack.c.l.bf16 %v236
    %v627 = vunpack.c.h.bf16 %v236
    %v628 = vunpack.c.l.bf16 %v237
    %v629 = vunpack.c.h.bf16 %v237
    %v630 = vld [vmem:[%s2] sm:$0xf]
    %v632 = vlaneseq
    %v633 = vshrl.u32 %v632, 7
    %v634 = vsub.s32 0, %v633
    %v635 = vrot.slane %v41, %v634
    %v636 = vlaneseq
    %v637 = vshrl.u32 %v636, 7
    %v638 = vsub.s32 1, %v637
    %v639 = vrot.slane %v41, %v638
    %v640 = vlaneseq
    %v641 = vshrl.u32 %v640, 7
    %v642 = vsub.s32 2, %v641
    %v643 = vrot.slane %v41, %v642
    %v644 = vlaneseq
    %v645 = vshrl.u32 %v644, 7
    %v646 = vsub.s32 3, %v645
    %v647 = vrot.slane %v41, %v646
    %v648 = vlaneseq
    %v649 = vshrl.u32 %v648, 7
    %v650 = vsub.s32 4, %v649
    %v651 = vrot.slane %v41, %v650
    %v652 = vlaneseq
    %v653 = vshrl.u32 %v652, 7
    %v654 = vsub.s32 5, %v653
    %v655 = vrot.slane %v41, %v654
    %v656 = vlaneseq
    %v657 = vshrl.u32 %v656, 7
    %v658 = vsub.s32 6, %v657
    %v659 = vrot.slane %v41, %v658
    %v667 = vlaneseq
    %v668 = vshrl.u32 %v667, 7
    %v669 = vsub.s32 0, %v668
    %v670 = vrot.slane %v630, %v669
    %v671 = vlaneseq
    %v672 = vshrl.u32 %v671, 7
    %v673 = vsub.s32 1, %v672
    %v674 = vrot.slane %v630, %v673
    %v675 = vlaneseq
    %v676 = vshrl.u32 %v675, 7
    %v677 = vsub.s32 2, %v676
    %v678 = vrot.slane %v630, %v677
    %v679 = vlaneseq
    %v680 = vshrl.u32 %v679, 7
    %v681 = vsub.s32 3, %v680
    %v682 = vrot.slane %v630, %v681
    %vm687 = vcmask 130048
    %v688 = vsel %vm687, %v659, 0
    %690 = vmatprep.subr.mxu0 %v239
    %691 = vmatpush1.msra.mxu0 %v238
    %692 = vmatprep.subr.mxu0 %v243
    %693 = vmatpush1.msra.mxu0 %v242
    %694 = vmatprep.subr.mxu0 %v247
    %695 = vmatpush1.msra.mxu0 %v246
    %696 = vmatprep.subr.mxu0 %v251
    %697 = vmatpush1.msra.mxu0 %v250
    %698 = vmatprep.subr.mxu0 %v255
    %699 = vmatpush1.msra.mxu0 %v254
    %700 = vmatprep.subr.mxu0 %v259
    %701 = vmatpush1.msra.mxu0 %v258
    %702 = vmatprep.subr.mxu0 %v263
    %703 = vmatpush1.msra.mxu0 %v262
    %704 = vmatprep.subr.mxu0 %v267
    %705 = vmatpush1.msra.mxu0 %v266
    %706 = vmatprep.subr.mxu0 %v271
    %707 = vmatpush1.msra.mxu0 %v270
    %708 = vmatprep.subr.mxu0 %v275
    %709 = vmatpush1.msra.mxu0 %v274
    %710 = vmatprep.subr.mxu0 %v279
    %711 = vmatpush1.msra.mxu0 %v278
    %712 = vmatprep.subr.mxu0 %v283
    %713 = vmatpush1.msra.mxu0 %v282
    %714 = vmatprep.subr.mxu0 %v287
    %715 = vmatpush1.msra.mxu0 %v286
    %716 = vmatprep.subr.mxu0 %v291
    %717 = vmatpush1.msra.mxu0 %v290
    %718 = vmatprep.subr.mxu0 %v295
    %719 = vmatpush1.msra.mxu0 %v294
    %720 = vmatprep.subr.mxu0 %v299
    %721 = vmatpush1.msra.mxu0 %v298
    %722 = vmatprep.subr.mxu0 %v303
    %723 = vmatpush1.msra.mxu0 %v302
    %724 = vmatprep.subr.mxu0 %v307
    %725 = vmatpush1.msra.mxu0 %v306
    %726 = vmatprep.subr.mxu0 %v311
    %727 = vmatpush1.msra.mxu0 %v310
    %728 = vmatprep.subr.mxu0 %v315
    %729 = vmatpush1.msra.mxu0 %v314
    %730 = vmatprep.subr.mxu0 %v319
    %731 = vmatpush1.msra.mxu0 %v318
    %732 = vmatprep.subr.mxu0 %v323
    %733 = vmatpush1.msra.mxu0 %v322
    %734 = vmatprep.subr.mxu0 %v327
    %735 = vmatpush1.msra.mxu0 %v326
    %736 = vmatprep.subr.mxu0 %v331
    %737 = vmatpush1.msra.mxu0 %v330
    %738 = vmatprep.subr.mxu0 %v335
    %739 = vmatpush1.msra.mxu0 %v334
    %740 = vmatprep.subr.mxu0 %v339
    %741 = vmatpush1.msra.mxu0 %v338
    %742 = vmatprep.subr.mxu0 %v343
    %743 = vmatpush1.msra.mxu0 %v342
    %744 = vmatprep.subr.mxu0 %v347
    %745 = vmatpush1.msra.mxu0 %v346
    %746 = vmatprep.subr.mxu0 %v351
    %747 = vmatpush1.msra.mxu0 %v350
    %748 = vmatprep.subr.mxu0 %v355
    %749 = vmatpush1.msra.mxu0 %v354
    %750 = vmatprep.subr.mxu0 %v359
    %751 = vmatpush1.msra.mxu0 %v358
    %752 = vmatprep.subr.mxu0 %v363
    %753 = vmatpush1.msra.mxu0 %v362
    %754 = vmatprep.mubr.f32.mxu0 %v639
    %755 = vmatmul.mubr.f32.gmra.mrb[0].mxu0 %v635
    %v756 = vpop.f32.mrb[0].mxu0
    %v757 = vadd.f32 %v670, %v756
    %v758 = vpop.f32.mrb[0].mxu0
    %v759 = vadd.f32 %v674, %v758
    %760 = vdwg.mxu0
    %761 = vmatprep.subr.mxu0 %v367
    %762 = vmatpush1.msra.mxu0 %v366
    %763 = vmatprep.subr.mxu0 %v371
    %764 = vmatpush1.msra.mxu0 %v370
    %765 = vmatprep.subr.mxu0 %v375
    %766 = vmatpush1.msra.mxu0 %v374
    %767 = vmatprep.subr.mxu0 %v379
    %768 = vmatpush1.msra.mxu0 %v378
    %769 = vmatprep.subr.mxu0 %v383
    %770 = vmatpush1.msra.mxu0 %v382
    %771 = vmatprep.subr.mxu0 %v387
    %772 = vmatpush1.msra.mxu0 %v386
    %773 = vmatprep.subr.mxu0 %v391
    %774 = vmatpush1.msra.mxu0 %v390
    %775 = vmatprep.subr.mxu0 %v395
    %776 = vmatpush1.msra.mxu0 %v394
    %777 = vmatprep.subr.mxu0 %v399
    %778 = vmatpush1.msra.mxu0 %v398
    %779 = vmatprep.subr.mxu0 %v403
    %780 = vmatpush1.msra.mxu0 %v402
    %781 = vmatprep.subr.mxu0 %v407
    %782 = vmatpush1.msra.mxu0 %v406
    %783 = vmatprep.subr.mxu0 %v411
    %784 = vmatpush1.msra.mxu0 %v410
    %785 = vmatprep.subr.mxu0 %v415
    %786 = vmatpush1.msra.mxu0 %v414
    %787 = vmatprep.subr.mxu0 %v419
    %788 = vmatpush1.msra.mxu0 %v418
    %789 = vmatprep.subr.mxu0 %v423
    %790 = vmatpush1.msra.mxu0 %v422
    %791 = vmatprep.subr.mxu0 %v427
    %792 = vmatpush1.msra.mxu0 %v426
    %793 = vmatprep.subr.mxu0 %v431
    %794 = vmatpush1.msra.mxu0 %v430
    %795 = vmatprep.subr.mxu0 %v435
    %796 = vmatpush1.msra.mxu0 %v434
    %797 = vmatprep.subr.mxu0 %v439
    %798 = vmatpush1.msra.mxu0 %v438
    %799 = vmatprep.subr.mxu0 %v443
    %800 = vmatpush1.msra.mxu0 %v442
    %801 = vmatprep.subr.mxu0 %v447
    %802 = vmatpush1.msra.mxu0 %v446
    %803 = vmatprep.subr.mxu0 %v451
    %804 = vmatpush1.msra.mxu0 %v450
    %805 = vmatprep.subr.mxu0 %v455
    %806 = vmatpush1.msra.mxu0 %v454
    %807 = vmatprep.subr.mxu0 %v459
    %808 = vmatpush1.msra.mxu0 %v458
    %809 = vmatprep.subr.mxu0 %v463
    %810 = vmatpush1.msra.mxu0 %v462
    %811 = vmatprep.subr.mxu0 %v467
    %812 = vmatpush1.msra.mxu0 %v466
    %813 = vmatprep.subr.mxu0 %v471
    %814 = vmatpush1.msra.mxu0 %v470
    %815 = vmatprep.subr.mxu0 %v475
    %816 = vmatpush1.msra.mxu0 %v474
    %817 = vmatprep.subr.mxu0 %v479
    %818 = vmatpush1.msra.mxu0 %v478
    %819 = vmatprep.subr.mxu0 %v483
    %820 = vmatpush1.msra.mxu0 %v482
    %821 = vmatprep.subr.mxu0 %v487
    %822 = vmatpush1.msra.mxu0 %v486
    %823 = vmatprep.subr.mxu0 %v491
    %824 = vmatpush1.msra.mxu0 %v490
    %825 = vmatprep.mubr.f32.mxu0 %v647
    %826 = vmatmul.mubr.f32.gmra.mrb[0].mxu0 %v643
    %v827 = vpop.f32.mrb[0].mxu0
    %v828 = vadd.f32 %v757, %v827
    %v829 = vpop.f32.mrb[0].mxu0
    %v830 = vadd.f32 %v759, %v829
    %831 = vdwg.mxu0
    %832 = vmatprep.subr.mxu0 %v495
    %833 = vmatpush1.msra.mxu0 %v494
    %834 = vmatprep.subr.mxu0 %v499
    %835 = vmatpush1.msra.mxu0 %v498
    %836 = vmatprep.subr.mxu0 %v503
    %837 = vmatpush1.msra.mxu0 %v502
    %838 = vmatprep.subr.mxu0 %v507
    %839 = vmatpush1.msra.mxu0 %v506
    %840 = vmatprep.subr.mxu0 %v511
    %841 = vmatpush1.msra.mxu0 %v510
    %842 = vmatprep.subr.mxu0 %v515
    %843 = vmatpush1.msra.mxu0 %v514
    %844 = vmatprep.subr.mxu0 %v519
    %845 = vmatpush1.msra.mxu0 %v518
    %846 = vmatprep.subr.mxu0 %v523
    %847 = vmatpush1.msra.mxu0 %v522
    %848 = vmatprep.subr.mxu0 %v527
    %849 = vmatpush1.msra.mxu0 %v526
    %850 = vmatprep.subr.mxu0 %v531
    %851 = vmatpush1.msra.mxu0 %v530
    %852 = vmatprep.subr.mxu0 %v535
    %853 = vmatpush1.msra.mxu0 %v534
    %854 = vmatprep.subr.mxu0 %v539
    %855 = vmatpush1.msra.mxu0 %v538
    %856 = vmatprep.subr.mxu0 %v543
    %857 = vmatpush1.msra.mxu0 %v542
    %858 = vmatprep.subr.mxu0 %v547
    %859 = vmatpush1.msra.mxu0 %v546
    %860 = vmatprep.subr.mxu0 %v551
    %861 = vmatpush1.msra.mxu0 %v550
    %862 = vmatprep.subr.mxu0 %v555
    %863 = vmatpush1.msra.mxu0 %v554
    %864 = vmatprep.subr.mxu0 %v559
    %865 = vmatpush1.msra.mxu0 %v558
    %866 = vmatprep.subr.mxu0 %v563
    %867 = vmatpush1.msra.mxu0 %v562
    %868 = vmatprep.subr.mxu0 %v567
    %869 = vmatpush1.msra.mxu0 %v566
    %870 = vmatprep.subr.mxu0 %v571
    %871 = vmatpush1.msra.mxu0 %v570
    %872 = vmatprep.subr.mxu0 %v575
    %873 = vmatpush1.msra.mxu0 %v574
    %874 = vmatprep.subr.mxu0 %v579
    %875 = vmatpush1.msra.mxu0 %v578
    %876 = vmatprep.subr.mxu0 %v583
    %877 = vmatpush1.msra.mxu0 %v582
    %878 = vmatprep.subr.mxu0 %v587
    %879 = vmatpush1.msra.mxu0 %v586
    %880 = vmatprep.subr.mxu0 %v591
    %881 = vmatpush1.msra.mxu0 %v590
    %882 = vmatprep.subr.mxu0 %v595
    %883 = vmatpush1.msra.mxu0 %v594
    %884 = vmatprep.subr.mxu0 %v599
    %885 = vmatpush1.msra.mxu0 %v598
    %886 = vmatprep.subr.mxu0 %v603
    %887 = vmatpush1.msra.mxu0 %v602
    %888 = vmatprep.subr.mxu0 %v607
    %889 = vmatpush1.msra.mxu0 %v606
    %890 = vmatprep.subr.mxu0 %v611
    %891 = vmatpush1.msra.mxu0 %v610
    %892 = vmatprep.subr.mxu0 %v615
    %893 = vmatpush1.msra.mxu0 %v614
    %894 = vmatprep.subr.mxu0 %v619
    %895 = vmatpush1.msra.mxu0 %v618
    %896 = vmatprep.mubr.f32.mxu0 %v655
    %897 = vmatmul.mubr.f32.gmra.mrb[0].mxu0 %v651
    %v898 = vpop.f32.mrb[0].mxu0
    %v899 = vadd.f32 %v828, %v898
    %v900 = vpop.f32.mrb[0].mxu0
    %v901 = vadd.f32 %v830, %v900
    %902 = vdwg.mxu0
    %903 = vmatprep.subr.mxu0 %v623
    %904 = vmatpush1.msra.mxu0 %v622
    %905 = vmatprep.subr.mxu0 %v627
    %906 = vmatpush1.msra.mxu0 %v626
    %907 = vmatprep.subr.mxu0 0.0
    %908 = vmatpush1.msra.mxu0 0.0
    %909 = vmatprep.subr.mxu0 0.0
    %910 = vmatpush1.msra.mxu0 0.0
    %911 = vmatprep.subr.mxu0 0.0
    %912 = vmatpush1.msra.mxu0 0.0
    %913 = vmatprep.subr.mxu0 0.0
    %914 = vmatpush1.msra.mxu0 0.0
    %915 = vmatprep.subr.mxu0 0.0
    %916 = vmatpush1.msra.mxu0 0.0
    %917 = vmatprep.subr.mxu0 0.0
    %918 = vmatpush1.msra.mxu0 0.0
    %919 = vmatprep.subr.mxu0 0.0
    %920 = vmatpush1.msra.mxu0 0.0
    %921 = vmatprep.subr.mxu0 0.0
    %922 = vmatpush1.msra.mxu0 0.0
    %923 = vmatprep.subr.mxu0 0.0
    %924 = vmatpush1.msra.mxu0 0.0
    %925 = vmatprep.subr.mxu0 0.0
    %926 = vmatpush1.msra.mxu0 0.0
    %927 = vmatprep.subr.mxu0 0.0
    %928 = vmatpush1.msra.mxu0 0.0
    %929 = vmatprep.subr.mxu0 0.0
    %930 = vmatpush1.msra.mxu0 0.0
    %931 = vmatprep.subr.mxu0 0.0
    %932 = vmatpush1.msra.mxu0 0.0
    %933 = vmatprep.subr.mxu0 0.0
    %934 = vmatpush1.msra.mxu0 0.0
    %935 = vmatprep.subr.mxu0 0.0
    %936 = vmatpush1.msra.mxu0 0.0
    %937 = vmatprep.subr.mxu0 0.0
    %938 = vmatpush1.msra.mxu0 0.0
    %939 = vmatprep.subr.mxu0 0.0
    %940 = vmatpush1.msra.mxu0 0.0
    %941 = vmatprep.subr.mxu0 0.0
    %942 = vmatpush1.msra.mxu0 0.0
    %943 = vmatprep.subr.mxu0 0.0
    %944 = vmatpush1.msra.mxu0 0.0
    %945 = vmatprep.subr.mxu0 0.0
    %946 = vmatpush1.msra.mxu0 0.0
    %947 = vmatprep.subr.mxu0 0.0
    %948 = vmatpush1.msra.mxu0 0.0
    %949 = vmatprep.subr.mxu0 0.0
    %950 = vmatpush1.msra.mxu0 0.0
    %951 = vmatprep.subr.mxu0 0.0
    %952 = vmatpush1.msra.mxu0 0.0
    %953 = vmatprep.subr.mxu0 0.0
    %954 = vmatpush1.msra.mxu0 0.0
    %955 = vmatprep.subr.mxu0 0.0
    %956 = vmatpush1.msra.mxu0 0.0
    %957 = vmatprep.subr.mxu0 0.0
    %958 = vmatpush1.msra.mxu0 0.0
    %959 = vmatprep.subr.mxu0 0.0
    %960 = vmatpush1.msra.mxu0 0.0
    %961 = vmatprep.subr.mxu0 0.0
    %962 = vmatpush1.msra.mxu0 0.0
    %963 = vmatprep.subr.mxu0 0.0
    %964 = vmatpush1.msra.mxu0 0.0
    %965 = vmatprep.subr.mxu0 0.0
    %966 = vmatpush1.msra.mxu0 0.0
    %967 = vmatprep.mubr.f32.mxu0 0.0
    %968 = vmatmul.mubr.f32.gmra.mrb[0].mxu0 %v688
    %v969 = vpop.f32.mrb[0].mxu0
    %v970 = vadd.f32 %v899, %v969
    %v971 = vpop.f32.mrb[0].mxu0
    %v972 = vadd.f32 %v901, %v971
    %973 = vdwg.mxu0
    %974 = vmatprep.subr.mxu0 %v241
    %975 = vmatpush1.msra.mxu0 %v240
    %976 = vmatprep.subr.mxu0 %v245
    %977 = vmatpush1.msra.mxu0 %v244
    %978 = vmatprep.subr.mxu0 %v249
    %979 = vmatpush1.msra.mxu0 %v248
    %980 = vmatprep.subr.mxu0 %v253
    %981 = vmatpush1.msra.mxu0 %v252
    %982 = vmatprep.subr.mxu0 %v257
    %983 = vmatpush1.msra.mxu0 %v256
    %984 = vmatprep.subr.mxu0 %v261
    %985 = vmatpush1.msra.mxu0 %v260
    %986 = vmatprep.subr.mxu0 %v265
    %987 = vmatpush1.msra.mxu0 %v264
    %988 = vmatprep.subr.mxu0 %v269
    %989 = vmatpush1.msra.mxu0 %v268
    %990 = vmatprep.subr.mxu0 %v273
    %991 = vmatpush1.msra.mxu0 %v272
    %992 = vmatprep.subr.mxu0 %v277
    %993 = vmatpush1.msra.mxu0 %v276
    %994 = vmatprep.subr.mxu0 %v281
    %995 = vmatpush1.msra.mxu0 %v280
    %996 = vmatprep.subr.mxu0 %v285
    %997 = vmatpush1.msra.mxu0 %v284
    %998 = vmatprep.subr.mxu0 %v289
    %999 = vmatpush1.msra.mxu0 %v288
    %1000 = vmatprep.subr.mxu0 %v293
    %1001 = vmatpush1.msra.mxu0 %v292
    %1002 = vmatprep.subr.mxu0 %v297
    %1003 = vmatpush1.msra.mxu0 %v296
    %1004 = vmatprep.subr.mxu0 %v301
    %1005 = vmatpush1.msra.mxu0 %v300
    %1006 = vmatprep.subr.mxu0 %v305
    %1007 = vmatpush1.msra.mxu0 %v304
    %1008 = vmatprep.subr.mxu0 %v309
    %1009 = vmatpush1.msra.mxu0 %v308
    %1010 = vmatprep.subr.mxu0 %v313
    %1011 = vmatpush1.msra.mxu0 %v312
    %1012 = vmatprep.subr.mxu0 %v317
    %1013 = vmatpush1.msra.mxu0 %v316
    %1014 = vmatprep.subr.mxu0 %v321
    %1015 = vmatpush1.msra.mxu0 %v320
    %1016 = vmatprep.subr.mxu0 %v325
    %1017 = vmatpush1.msra.mxu0 %v324
    %1018 = vmatprep.subr.mxu0 %v329
    %1019 = vmatpush1.msra.mxu0 %v328
    %1020 = vmatprep.subr.mxu0 %v333
    %1021 = vmatpush1.msra.mxu0 %v332
    %1022 = vmatprep.subr.mxu0 %v337
    %1023 = vmatpush1.msra.mxu0 %v336
    %1024 = vmatprep.subr.mxu0 %v341
    %1025 = vmatpush1.msra.mxu0 %v340
    %1026 = vmatprep.subr.mxu0 %v345
    %1027 = vmatpush1.msra.mxu0 %v344
    %1028 = vmatprep.subr.mxu0 %v349
    %1029 = vmatpush1.msra.mxu0 %v348
    %1030 = vmatprep.subr.mxu0 %v353
    %1031 = vmatpush1.msra.mxu0 %v352
    %1032 = vmatprep.subr.mxu0 %v357
    %1033 = vmatpush1.msra.mxu0 %v356
    %1034 = vmatprep.subr.mxu0 %v361
    %1035 = vmatpush1.msra.mxu0 %v360
    %1036 = vmatprep.subr.mxu0 %v365
    %1037 = vmatpush1.msra.mxu0 %v364
    %1038 = vmatprep.mubr.f32.mxu0 %v639
    %1039 = vmatmul.mubr.f32.gmra.mrb[0].mxu0 %v635
    %v1040 = vpop.f32.mrb[0].mxu0
    %v1041 = vadd.f32 %v678, %v1040
    %v1042 = vpop.f32.mrb[0].mxu0
    %v1043 = vadd.f32 %v682, %v1042
    %1044 = vdwg.mxu0
    %1045 = vmatprep.subr.mxu0 %v369
    %1046 = vmatpush1.msra.mxu0 %v368
    %1047 = vmatprep.subr.mxu0 %v373
    %1048 = vmatpush1.msra.mxu0 %v372
    %1049 = vmatprep.subr.mxu0 %v377
    %1050 = vmatpush1.msra.mxu0 %v376
    %1051 = vmatprep.subr.mxu0 %v381
    %1052 = vmatpush1.msra.mxu0 %v380
    %1053 = vmatprep.subr.mxu0 %v385
    %1054 = vmatpush1.msra.mxu0 %v384
    %1055 = vmatprep.subr.mxu0 %v389
    %1056 = vmatpush1.msra.mxu0 %v388
    %1057 = vmatprep.subr.mxu0 %v393
    %1058 = vmatpush1.msra.mxu0 %v392
    %1059 = vmatprep.subr.mxu0 %v397
    %1060 = vmatpush1.msra.mxu0 %v396
    %1061 = vmatprep.subr.mxu0 %v401
    %1062 = vmatpush1.msra.mxu0 %v400
    %1063 = vmatprep.subr.mxu0 %v405
    %1064 = vmatpush1.msra.mxu0 %v404
    %1065 = vmatprep.subr.mxu0 %v409
    %1066 = vmatpush1.msra.mxu0 %v408
    %1067 = vmatprep.subr.mxu0 %v413
    %1068 = vmatpush1.msra.mxu0 %v412
    %1069 = vmatprep.subr.mxu0 %v417
    %1070 = vmatpush1.msra.mxu0 %v416
    %1071 = vmatprep.subr.mxu0 %v421
    %1072 = vmatpush1.msra.mxu0 %v420
    %1073 = vmatprep.subr.mxu0 %v425
    %1074 = vmatpush1.msra.mxu0 %v424
    %1075 = vmatprep.subr.mxu0 %v429
    %1076 = vmatpush1.msra.mxu0 %v428
    %1077 = vmatprep.subr.mxu0 %v433
    %1078 = vmatpush1.msra.mxu0 %v432
    %1079 = vmatprep.subr.mxu0 %v437
    %1080 = vmatpush1.msra.mxu0 %v436
    %1081 = vmatprep.subr.mxu0 %v441
    %1082 = vmatpush1.msra.mxu0 %v440
    %1083 = vmatprep.subr.mxu0 %v445
    %1084 = vmatpush1.msra.mxu0 %v444
    %1085 = vmatprep.subr.mxu0 %v449
    %1086 = vmatpush1.msra.mxu0 %v448
    %1087 = vmatprep.subr.mxu0 %v453
    %1088 = vmatpush1.msra.mxu0 %v452
    %1089 = vmatprep.subr.mxu0 %v457
    %1090 = vmatpush1.msra.mxu0 %v456
    %1091 = vmatprep.subr.mxu0 %v461
    %1092 = vmatpush1.msra.mxu0 %v460
    %1093 = vmatprep.subr.mxu0 %v465
    %1094 = vmatpush1.msra.mxu0 %v464
    %1095 = vmatprep.subr.mxu0 %v469
    %1096 = vmatpush1.msra.mxu0 %v468
    %1097 = vmatprep.subr.mxu0 %v473
    %1098 = vmatpush1.msra.mxu0 %v472
    %1099 = vmatprep.subr.mxu0 %v477
    %1100 = vmatpush1.msra.mxu0 %v476
    %1101 = vmatprep.subr.mxu0 %v481
    %1102 = vmatpush1.msra.mxu0 %v480
    %1103 = vmatprep.subr.mxu0 %v485
    %1104 = vmatpush1.msra.mxu0 %v484
    %1105 = vmatprep.subr.mxu0 %v489
    %1106 = vmatpush1.msra.mxu0 %v488
    %1107 = vmatprep.subr.mxu0 %v493
    %1108 = vmatpush1.msra.mxu0 %v492
    %1109 = vmatprep.mubr.f32.mxu0 %v647
    %1110 = vmatmul.mubr.f32.gmra.mrb[0].mxu0 %v643
    %v1111 = vpop.f32.mrb[0].mxu0
    %v1112 = vadd.f32 %v1041, %v1111
    %v1113 = vpop.f32.mrb[0].mxu0
    %v1114 = vadd.f32 %v1043, %v1113
    %1115 = vdwg.mxu0
    %1116 = vmatprep.subr.mxu0 %v497
    %1117 = vmatpush1.msra.mxu0 %v496
    %1118 = vmatprep.subr.mxu0 %v501
    %1119 = vmatpush1.msra.mxu0 %v500
    %1120 = vmatprep.subr.mxu0 %v505
    %1121 = vmatpush1.msra.mxu0 %v504
    %1122 = vmatprep.subr.mxu0 %v509
    %1123 = vmatpush1.msra.mxu0 %v508
    %1124 = vmatprep.subr.mxu0 %v513
    %1125 = vmatpush1.msra.mxu0 %v512
    %1126 = vmatprep.subr.mxu0 %v517
    %1127 = vmatpush1.msra.mxu0 %v516
    %1128 = vmatprep.subr.mxu0 %v521
    %1129 = vmatpush1.msra.mxu0 %v520
    %1130 = vmatprep.subr.mxu0 %v525
    %1131 = vmatpush1.msra.mxu0 %v524
    %1132 = vmatprep.subr.mxu0 %v529
    %1133 = vmatpush1.msra.mxu0 %v528
    %1134 = vmatprep.subr.mxu0 %v533
    %1135 = vmatpush1.msra.mxu0 %v532
    %1136 = vmatprep.subr.mxu0 %v537
    %1137 = vmatpush1.msra.mxu0 %v536
    %1138 = vmatprep.subr.mxu0 %v541
    %1139 = vmatpush1.msra.mxu0 %v540
    %1140 = vmatprep.subr.mxu0 %v545
    %1141 = vmatpush1.msra.mxu0 %v544
    %1142 = vmatprep.subr.mxu0 %v549
    %1143 = vmatpush1.msra.mxu0 %v548
    %1144 = vmatprep.subr.mxu0 %v553
    %1145 = vmatpush1.msra.mxu0 %v552
    %1146 = vmatprep.subr.mxu0 %v557
    %1147 = vmatpush1.msra.mxu0 %v556
    %1148 = vmatprep.subr.mxu0 %v561
    %1149 = vmatpush1.msra.mxu0 %v560
    %1150 = vmatprep.subr.mxu0 %v565
    %1151 = vmatpush1.msra.mxu0 %v564
    %1152 = vmatprep.subr.mxu0 %v569
    %1153 = vmatpush1.msra.mxu0 %v568
    %1154 = vmatprep.subr.mxu0 %v573
    %1155 = vmatpush1.msra.mxu0 %v572
    %1156 = vmatprep.subr.mxu0 %v577
    %1157 = vmatpush1.msra.mxu0 %v576
    %1158 = vmatprep.subr.mxu0 %v581
    %1159 = vmatpush1.msra.mxu0 %v580
    %1160 = vmatprep.subr.mxu0 %v585
    %1161 = vmatpush1.msra.mxu0 %v584
    %1162 = vmatprep.subr.mxu0 %v589
    %1163 = vmatpush1.msra.mxu0 %v588
    %1164 = vmatprep.subr.mxu0 %v593
    %1165 = vmatpush1.msra.mxu0 %v592
    %1166 = vmatprep.subr.mxu0 %v597
    %1167 = vmatpush1.msra.mxu0 %v596
    %1168 = vmatprep.subr.mxu0 %v601
    %1169 = vmatpush1.msra.mxu0 %v600
    %1170 = vmatprep.subr.mxu0 %v605
    %1171 = vmatpush1.msra.mxu0 %v604
    %1172 = vmatprep.subr.mxu0 %v609
    %1173 = vmatpush1.msra.mxu0 %v608
    %1174 = vmatprep.subr.mxu0 %v613
    %1175 = vmatpush1.msra.mxu0 %v612
    %1176 = vmatprep.subr.mxu0 %v617
    %1177 = vmatpush1.msra.mxu0 %v616
    %1178 = vmatprep.subr.mxu0 %v621
    %1179 = vmatpush1.msra.mxu0 %v620
    %1180 = vmatprep.mubr.f32.mxu0 %v655
    %1181 = vmatmul.mubr.f32.gmra.mrb[0].mxu0 %v651
    %v1182 = vpop.f32.mrb[0].mxu0
    %v1183 = vadd.f32 %v1112, %v1182
    %v1184 = vpop.f32.mrb[0].mxu0
    %v1185 = vadd.f32 %v1114, %v1184
    %1186 = vdwg.mxu0
    %1187 = vmatprep.subr.mxu0 %v625
    %1188 = vmatpush1.msra.mxu0 %v624
    %1189 = vmatprep.subr.mxu0 %v629
    %1190 = vmatpush1.msra.mxu0 %v628
    %1191 = vmatprep.subr.mxu0 0.0
    %1192 = vmatpush1.msra.mxu0 0.0
    %1193 = vmatprep.subr.mxu0 0.0
    %1194 = vmatpush1.msra.mxu0 0.0
    %1195 = vmatprep.subr.mxu0 0.0
    %1196 = vmatpush1.msra.mxu0 0.0
    %1197 = vmatprep.subr.mxu0 0.0
    %1198 = vmatpush1.msra.mxu0 0.0
    %1199 = vmatprep.subr.mxu0 0.0
    %1200 = vmatpush1.msra.mxu0 0.0
    %1201 = vmatprep.subr.mxu0 0.0
    %1202 = vmatpush1.msra.mxu0 0.0
    %1203 = vmatprep.subr.mxu0 0.0
    %1204 = vmatpush1.msra.mxu0 0.0
    %1205 = vmatprep.subr.mxu0 0.0
    %1206 = vmatpush1.msra.mxu0 0.0
    %1207 = vmatprep.subr.mxu0 0.0
    %1208 = vmatpush1.msra.mxu0 0.0
    %1209 = vmatprep.subr.mxu0 0.0
    %1210 = vmatpush1.msra.mxu0 0.0
    %1211 = vmatprep.subr.mxu0 0.0
    %1212 = vmatpush1.msra.mxu0 0.0
    %1213 = vmatprep.subr.mxu0 0.0
    %1214 = vmatpush1.msra.mxu0 0.0
    %1215 = vmatprep.subr.mxu0 0.0
    %1216 = vmatpush1.msra.mxu0 0.0
    %1217 = vmatprep.subr.mxu0 0.0
    %1218 = vmatpush1.msra.mxu0 0.0
    %1219 = vmatprep.subr.mxu0 0.0
    %1220 = vmatpush1.msra.mxu0 0.0
    %1221 = vmatprep.subr.mxu0 0.0
    %1222 = vmatpush1.msra.mxu0 0.0
    %1223 = vmatprep.subr.mxu0 0.0
    %1224 = vmatpush1.msra.mxu0 0.0
    %1225 = vmatprep.subr.mxu0 0.0
    %1226 = vmatpush1.msra.mxu0 0.0
    %1227 = vmatprep.subr.mxu0 0.0
    %1228 = vmatpush1.msra.mxu0 0.0
    %1229 = vmatprep.subr.mxu0 0.0
    %1230 = vmatpush1.msra.mxu0 0.0
    %1231 = vmatprep.subr.mxu0 0.0
    %1232 = vmatpush1.msra.mxu0 0.0
    %1233 = vmatprep.subr.mxu0 0.0
    %1234 = vmatpush1.msra.mxu0 0.0
    %1235 = vmatprep.subr.mxu0 0.0
    %1236 = vmatpush1.msra.mxu0 0.0
    %1237 = vmatprep.subr.mxu0 0.0
    %1238 = vmatpush1.msra.mxu0 0.0
    %1239 = vmatprep.subr.mxu0 0.0
    %1240 = vmatpush1.msra.mxu0 0.0
    %1241 = vmatprep.subr.mxu0 0.0
    %1242 = vmatpush1.msra.mxu0 0.0
    %1243 = vmatprep.subr.mxu0 0.0
    %1244 = vmatpush1.msra.mxu0 0.0
    %1245 = vmatprep.subr.mxu0 0.0
    %1246 = vmatpush1.msra.mxu0 0.0
    %1247 = vmatprep.subr.mxu0 0.0
    %1248 = vmatpush1.msra.mxu0 0.0
    %1249 = vmatprep.subr.mxu0 0.0
    %1250 = vmatpush1.msra.mxu0 0.0
    %1251 = vmatprep.mubr.f32.mxu0 0.0
    %1252 = vmatmul.mubr.f32.gmra.mrb[0].mxu0 %v688
    %v1253 = vpop.f32.mrb[0].mxu0
    %v1254 = vadd.f32 %v1183, %v1253
    %v1255 = vpop.f32.mrb[0].mxu0
    %v1256 = vadd.f32 %v1185, %v1255
    %1257 = vdwg.mxu0
    %v1258 = vtanh.pop %v970
    %v1259 = vtanh.pop %v972
    %v1260 = vtanh.pop %v1254
    %v1261 = vtanh.pop %v1256
    %v1266 = vcombine.low %v1258, %v1259
    %v1267 = vcombine.low %v1260, %v1261
    %v1269 = vunpack.c.l.s4 1966171168
    %v1270 = vunpack.c.0.s8 %v1269
    %v1271 = vlaneseq
    %v1272 = vshrl.u32 %v1271, 7
    %v1273 = vsub.s32 %v1270, %v1272
    %v1274 = vrot.slane %v1266, %v1273
    %v1276 = vunpack.c.l.s4 1966171168
    %v1277 = vunpack.c.0.s8 %v1276
    %v1278 = vlaneseq
    %v1279 = vshrl.u32 %v1278, 7
    %v1280 = vsub.s32 %v1277, %v1279
    %v1281 = vrot.slane %v1267, %v1280
    %v1282 = vcombine.low %v1274, %v1281
    %v1284 = vunpack.c.l.s4 1966171168
    %v1285 = vunpack.c.0.s8 %v1284
    %v1286 = vlaneseq
    %v1287 = vshrl.u32 %v1286, 7
    %v1288 = vsub.s32 %v1285, %v1287
    %v1289 = vrot.slane %v1282, %v1288
    %v1291 = vlaneseq
    %vm1292 = vcmp.ge.s32.totalorder %v1291, 0
    %vm1293 = vcmp.lt.s32.totalorder %v1291, 512
    %vm1294 = vmand %vm1292, %vm1293
    %1295 = vst.msk [vmem:[#allocation7] sm:$0xf] %vm1294, %v1289
    // Predicated region
    $region22: #{tpu_custom_call.1} parent=1 // pred_check
      _
    $region23: #{tpu_custom_call.1} parent=1 // pred_check_branch
      %1297 = sbr.rel (0) target = $region25
    $region24: #{tpu_custom_call.1} parent=1 // pred_region
      %s1299 = ssub.s32 64, 64
      %1300 = vsyncadd [#allocation4], %s1299
      %s1302 = sshll.u32 [#allocation7], 4
      %s1303 = int_to_ptr.vmem [resolvable:$true] %s1302
      %1305 = dma.vmem_to_hbm [thread:$0]  %s1303, 64, %s3, [#allocation4]
    $region25: #{tpu_custom_call.1} parent=1 // pred_fallthru
      _
    // Predicated region
    $region26: #{tpu_custom_call.1} parent=1 // pred_check
      _
    $region27: #{tpu_custom_call.1} parent=1 // pred_check_branch
      %1307 = sbr.rel (0) target = $region29
    $region28: #{tpu_custom_call.1} parent=1 // pred_region
      %1308 = dma.done [#allocation4], 64
    $region29: #{tpu_custom_call.1} parent=1 // pred_fallthru
      _
    %1309 = vsyncpa [#allocation3], 1
    %1310 = vsyncpa [#allocation6], 1
    %1311 = vsyncpa [#allocation4], 1

</llo_original>
